<compile_context>
chip_gen: v6e
topology: v6e:2x2x1
jax: 0.10.0
libtpu: 0.0.40
codegen_flags: <defaults>
</compile_context>

<pallas_src>
import functools

import jax
import jax.numpy as jnp
from jax import lax
from jax.experimental import pallas as pl
from jax.experimental.pallas import tpu as pltpu


def _round_up(x: int, m: int) -> int:
    return (x + m - 1) // m * m


def _attn_kernel(h_ref, enc_ref, out_ref, *, seq_len: int, tile_s: int, s_pad: int):
    k = pl.program_id(0)
    nk = pl.num_programs(0)

    h = h_ref[...]        # (1, H)
    e = enc_ref[...]      # (tile_s, H)   (boundary block may contain garbage rows)

    # energies[i] = dot(hidden, enc[i]); contract on the minor dim of BOTH
    # operands so no explicit transpose of the encoder tile is requested.
    energies = lax.dot_general(
        h, e,
        dimension_numbers=(((1,), (1,)), ((), ())),
        preferred_element_type=jnp.float32,
    )                                                       # (1, tile_s)

    start = pl.multiple_of(k * tile_s, 128)
    out_ref[:, pl.ds(start, tile_s)] = energies

    # Finalize: masked, max-stabilized softmax over the resident (1, s_pad) row.
    @pl.when(k == nk - 1)
    def _():
        row = out_ref[...]                                  # (1, s_pad)
        idx = lax.broadcasted_iota(jnp.int32, (1, s_pad), 1)
        # Mask BEFORE max/exp so garbage lanes from the partial boundary block
        # (and output padding) can never poison the softmax.
        row = jnp.where(idx < seq_len, row, -jnp.inf)
        m = jnp.max(row, axis=-1, keepdims=True)
        p = jnp.exp(row - m)                                # masked lanes -> 0
        denom = jnp.sum(p, axis=-1, keepdims=True)
        out_ref[...] = p / denom                            # exact normalization


def attn_forward(hidden, encoder_outputs):
    """hidden: (1, H), encoder_outputs: (S, H) -> (1, 1, S) attention weights."""
    S, H = encoder_outputs.shape
    itemsize = jnp.dtype(encoder_outputs.dtype).itemsize
    row_bytes = H * itemsize

    # Tile selection: size the streamed encoder tile by BYTES (~2 MiB target,
    # <= 8 MiB hard cap so the double-buffer stays small), rows a multiple of
    # 128 for lane-aligned writes into the resident output row.
    TARGET_TILE_BYTES = 2 << 20
    MAX_TILE_BYTES = 8 << 20
    ts = max(TARGET_TILE_BYTES // row_bytes, 1)
    ts = _round_up(ts, 128)
    ts = min(ts, 4096)
    while ts > 128 and ts * row_bytes > MAX_TILE_BYTES:
        ts -= 128
    ts = min(ts, _round_up(S, 128))   # don't over-tile tiny sequences
    ts = max(ts, 128)

    grid_s = pl.cdiv(S, ts)           # stream the UNPADDED array; boundary block is partial
    s_pad = grid_s * ts               # lane-dense resident output row width

    # VMEM plan: double-buffered encoder tile (+ slack for a possible per-tile
    # transpose copy inside the matmul lowering) + resident row + hidden,
    # plus headroom for compiler scratch.  Clamp so it fits every generation
    # (v5e default scoped limit is only 16 MiB; v7x physical VMEM is 64 MiB).
    vmem_need = 3 * ts * row_bytes + s_pad * 4 + 2 * H * itemsize
    vmem_limit = int(min(max(vmem_need + (8 << 20), 32 << 20), 48 << 20))

    kernel = functools.partial(_attn_kernel, seq_len=S, tile_s=ts, s_pad=s_pad)

    probs_row = pl.pallas_call(
        kernel,
        out_shape=jax.ShapeDtypeStruct((1, s_pad), jnp.float32),
        grid_spec=pltpu.PrefetchScalarGridSpec(
            num_scalar_prefetch=0,
            grid=(grid_s,),
            in_specs=[
                pl.BlockSpec((1, H), lambda k: (0, 0)),     # hidden: resident
                pl.BlockSpec((ts, H), lambda k: (k, 0)),    # encoder tile: streamed
            ],
            out_specs=pl.BlockSpec((1, s_pad), lambda k: (0, 0)),  # resident row
        ),
        compiler_params=pltpu.CompilerParams(
            # Last-step finalize reads all earlier writes to the resident
            # output block -> this axis must stay "arbitrary".
            dimension_semantics=("arbitrary",),
            vmem_limit_bytes=vmem_limit,
        ),
    )(hidden, encoder_outputs)

    return probs_row[:, :S].reshape(1, 1, S)


def attn_reference(hidden, encoder_outputs):
    # pure-JAX reference (the Linear output is discarded in the PyTorch code too)
    energies = encoder_outputs @ hidden.reshape(-1)          # (S,)
    return jax.nn.softmax(energies)[None, None, :]           # (1, 1, S)


if __name__ == "__main__":
    seq_len = 8
    hidden_size = 32

    key = jax.random.PRNGKey(0)
    k_h, k_e = jax.random.split(key, 2)

    hidden = jax.random.normal(k_h, (1, hidden_size), dtype=jnp.float32)
    encoder_outputs = jax.random.normal(k_e, (seq_len, hidden_size), dtype=jnp.float32)

    out = attn_forward(hidden, encoder_outputs)
    out = jax.block_until_ready(out)

    ref = attn_reference(hidden, encoder_outputs)
    assert out.shape == (1, 1, seq_len), out.shape
    assert jnp.allclose(out, ref, atol=1e-5, rtol=1e-5), (out, ref)
    assert jnp.allclose(jnp.sum(out), 1.0, atol=1e-5)

    print("KERNEL_OK")
</pallas_src>

<mosaic_0001>
module attributes {stable_mosaic.version = 11 : i64} {
  func.func @_attn_kernel(%arg0: i32, %arg1: memref<1x32xf32, #tpu.memory_space<vmem>>, %arg2: memref<128x32xf32, #tpu.memory_space<vmem>>, %arg3: memref<1x128xf32, #tpu.memory_space<vmem>>) attributes {dimension_semantics = [#tpu.dimension_semantics<arbitrary>], iteration_bounds = array<i64: 1>, scalar_prefetch = 0 : i64, scratch_operands = 0 : i64, tpu.core_type = #tpu.core_type<tc>, window_params = [{pipeline_mode = #tpu.pipeline_mode<synchronous>, transform_indices = @transform_0, window_bounds = array<i64: 1, 32>}, {transform_indices = @transform_1, window_bounds = array<i64: 128, 32>}, {pipeline_mode = #tpu.pipeline_mode<synchronous>, transform_indices = @transform_2, window_bounds = array<i64: 1, 128>}]} {
    %c0 = arith.constant 0 : index
    %c0_0 = arith.constant 0 : index
    %0 = vector.load %arg1[%c0, %c0_0] : memref<1x32xf32, #tpu.memory_space<vmem>>, vector<1x32xf32>
    %c0_1 = arith.constant 0 : index
    %c0_2 = arith.constant 0 : index
    %1 = vector.load %arg2[%c0_1, %c0_2] : memref<128x32xf32, #tpu.memory_space<vmem>>, vector<128x32xf32>
    %cst = arith.constant dense<0.000000e+00> : vector<1x128xf32>
    %2 = tpu.matmul %0, %1, %cst {dimension_numbers = #tpu.dot_dimension_numbers<[1], [1], [0], [0], [0, 0, 1, 0], [], []>} : vector<1x32xf32>, vector<128x32xf32>, vector<1x128xf32> -> vector<1x128xf32>
    %c128_i32 = arith.constant 128 : i32
    %3 = arith.muli %arg0, %c128_i32 : i32
    %4 = tpu.assume_multiple %3, 128 : i32
    %c0_3 = arith.constant 0 : index
    %5 = arith.index_cast %4 : i32 to index
    %6 = vector.load %arg3[%c0_3, %5] : memref<1x128xf32, #tpu.memory_space<vmem>>, vector<1x128xf32>
    tpu.vector_store %arg3[%c0_3, %5], %2 {strides = array<i32>} : memref<1x128xf32, #tpu.memory_space<vmem>>, vector<1x128xf32>,
    %c0_i32 = arith.constant 0 : i32
    %7 = arith.cmpi eq, %arg0, %c0_i32 : i32
    %8 = arith.extui %7 : i1 to i32
    %c0_i32_4 = arith.constant 0 : i32
    %9 = arith.cmpi ne, %8, %c0_i32_4 : i32
    scf.if %9 {
      %c0_5 = arith.constant 0 : index
      %c0_6 = arith.constant 0 : index
      %10 = vector.load %arg3[%c0_5, %c0_6] : memref<1x128xf32, #tpu.memory_space<vmem>>, vector<1x128xf32>
      %11 = tpu.iota {dimensions = array<i32: 1>} : vector<1x128xi32>
      %c8_i32 = arith.constant 8 : i32
      %12 = vector.broadcast %c8_i32 : i32 to vector<1x128xi32>
      %13 = arith.cmpi slt, %11, %12 : vector<1x128xi32>
      %cst_7 = arith.constant 0xFF800000 : f32
      %14 = vector.broadcast %cst_7 : f32 to vector<1x128xf32>
      %15 = arith.select %13, %10, %14 : vector<1x128xi1>, vector<1x128xf32>
      %cst_8 = arith.constant dense<0xFF800000> : vector<1xf32>
      %16 = vector.multi_reduction <maximumf>, %15, %cst_8 [1] : vector<1x128xf32> to vector<1xf32>
      %17 = vector.shape_cast %16 : vector<1xf32> to vector<1x1xf32>
      %18 = vector.broadcast %17 : vector<1x1xf32> to vector<1x128xf32>
      %19 = arith.subf %15, %18 : vector<1x128xf32>
      %20 = math.exp %19 : vector<1x128xf32>
      %cst_9 = arith.constant dense<0.000000e+00> : vector<1xf32>
      %21 = vector.multi_reduction <add>, %20, %cst_9 [1] : vector<1x128xf32> to vector<1xf32>
      %22 = vector.shape_cast %21 : vector<1xf32> to vector<1x1xf32>
      %23 = vector.broadcast %22 : vector<1x1xf32> to vector<1x128xf32>
      %24 = arith.divf %20, %23 : vector<1x128xf32>
      %c0_10 = arith.constant 0 : index
      %c0_11 = arith.constant 0 : index
      %25 = vector.load %arg3[%c0_10, %c0_11] : memref<1x128xf32, #tpu.memory_space<vmem>>, vector<1x128xf32>
      tpu.vector_store %arg3[%c0_10, %c0_11], %24 {strides = array<i32>} : memref<1x128xf32, #tpu.memory_space<vmem>>, vector<1x128xf32>,
    } else {
    }
    return
  }
  func.func @transform_0(%arg0: i32) -> (i32, i32) {
    %c0_i32 = arith.constant 0 : i32
    %c0_i32_0 = arith.constant 0 : i32
    %c0_i32_1 = arith.constant 0 : i32
    return %c0_i32, %c0_i32_0 : i32, i32
  }
  func.func @transform_1(%arg0: i32) -> (i32, i32) {
    %c0_i32 = arith.constant 0 : i32
    %c0_i32_0 = arith.constant 0 : i32
    return %arg0, %c0_i32 : i32, i32
  }
  func.func @transform_2(%arg0: i32) -> (i32, i32) {
    %c0_i32 = arith.constant 0 : i32
    %c0_i32_0 = arith.constant 0 : i32
    %c0_i32_1 = arith.constant 0 : i32
    return %c0_i32, %c0_i32_0 : i32, i32
  }
}

</mosaic_0001>

<llo_original>
// kernel: tpu_custom_call.1
$region0: #{tpu_custom_call.1}
  #allocation0 [shape = 'u32[]', space=smem, size = 0x4, offset = 0x4, fixed_abs, tag = 'smem constant byte address 0x4 - core index']
  #allocation1 [shape = 'u32[144,128]{1,0:T(1,128)}', space=vmem, size = 0x12000, scoped, tag = 'internal scratch']
  %s0 = inlined_call_operand.hbm [shape: f32[1,32], index: 0, kind: input, shape index: {}]
  %s1 = inlined_call_operand.hbm [shape: f32[8,32], index: 1, kind: input, shape index: {}]
  %s2 = inlined_call_operand.hbm [shape: f32[1,128], index: 2, kind: output, shape index: {}]
  %s3 = sld [smem:[#allocation0]]
  $region30: #{tpu_custom_call.1} parent=0
    _
  %s5 = ssub.s32 1, %s3
  %s6 = scalar_select 0, %s5, %s3
  $region1: #{tpu_custom_call.1} parent=0
    #allocation2 [shape = 'u8[512]{0}', space=vmem, size = 0x400, scoped, tag = 'input window, operand 0, single buffered']
    #allocation3 [shape = 's32[1]{0}', space=sflag, size = 0x4, scoped, tag = 'scoped memory for tpu_custom_call.1']
    #allocation4 [shape = 's32[1]{0}', space=sflag, size = 0x4, scoped, tag = 'scoped memory for tpu_custom_call.1']
    #allocation5 [shape = 'u8[65536]{0}', space=vmem, size = 0x10000, scoped, tag = 'input window, operand 1, single buffered']
    #allocation6 [shape = 's32[1]{0}', space=sflag, size = 0x4, scoped, tag = 'scoped memory for tpu_custom_call.1']
    #allocation7 [shape = 'u8[512]{0}', space=vmem, size = 0x400, scoped, tag = 'output window, operand 0, single buffered']
    %7 = vsyncpa [#allocation3], 0
    %8 = vsyncpa [#allocation6], 0
    %9 = vsyncpa [#allocation4], 0
    // Predicated region
    $region2: #{tpu_custom_call.1} parent=1 // pred_check
      _
    $region3: #{tpu_custom_call.1} parent=1 // pred_check_branch
      %11 = sbr.rel (0) target = $region5
    $region4: #{tpu_custom_call.1} parent=1 // pred_region
      %s13 = ssub.s32 16, 16
      %14 = vsyncadd [#allocation3], %s13
      %s16 = sshll.u32 [#allocation2], 4
      %s17 = int_to_ptr.vmem [resolvable:$true] %s16
      %19 = dma.hbm_to_vmem [thread:$0]  %s0, 16, %s17, [#allocation3]
    $region5: #{tpu_custom_call.1} parent=1 // pred_fallthru
      _
    // Predicated region
    $region6: #{tpu_custom_call.1} parent=1 // pred_check
      _
    $region7: #{tpu_custom_call.1} parent=1 // pred_check_branch
      %21 = sbr.rel (0) target = $region9
    $region8: #{tpu_custom_call.1} parent=1 // pred_region
      %s23 = ssub.s32 2048, 128
      %24 = vsyncadd [#allocation6], %s23
      %s25 = sshll.u32 [#allocation5], 4
      %s26 = int_to_ptr.vmem [resolvable:$true] %s25
      %31 = dma.hbm_to_vmem [thread:$0]  %s1, 128, %s26, [#allocation6], 128, 128, 8
    $region9: #{tpu_custom_call.1} parent=1 // pred_fallthru
      _
    // Predicated region
    $region10: #{tpu_custom_call.1} parent=1 // pred_check
      _
    $region11: #{tpu_custom_call.1} parent=1 // pred_check_branch
      %33 = sbr.rel (0) target = $region13
    $region12: #{tpu_custom_call.1} parent=1 // pred_region
      %34 = dma.done [#allocation3], 16
    $region13: #{tpu_custom_call.1} parent=1 // pred_fallthru
      _
    // Predicated region
    $region14: #{tpu_custom_call.1} parent=1 // pred_check
      _
    $region15: #{tpu_custom_call.1} parent=1 // pred_check_branch
      %36 = sbr.rel (0) target = $region17
    $region16: #{tpu_custom_call.1} parent=1 // pred_region
      %37 = dma.done [#allocation6], 2048
    $region17: #{tpu_custom_call.1} parent=1 // pred_fallthru
      _
    %v38 = vld [vmem:[#allocation2] sm:$0x1]
    %v39 = vld [vmem:[#allocation5] sm:$0xff]
    %v40 = vld [vmem:[#allocation5 + $0x8] sm:$0xff]
    %v41 = vld [vmem:[#allocation5 + $0x10] sm:$0xff]
    %v42 = vld [vmem:[#allocation5 + $0x18] sm:$0xff]
    %v43 = vld [vmem:[#allocation5 + $0x20] sm:$0xff]
    %v44 = vld [vmem:[#allocation5 + $0x28] sm:$0xff]
    %v45 = vld [vmem:[#allocation5 + $0x30] sm:$0xff]
    %v46 = vld [vmem:[#allocation5 + $0x38] sm:$0xff]
    %v47 = vld [vmem:[#allocation5 + $0x40] sm:$0xff]
    %v48 = vld [vmem:[#allocation5 + $0x48] sm:$0xff]
    %v49 = vld [vmem:[#allocation5 + $0x50] sm:$0xff]
    %v50 = vld [vmem:[#allocation5 + $0x58] sm:$0xff]
    %v51 = vld [vmem:[#allocation5 + $0x60] sm:$0xff]
    %v52 = vld [vmem:[#allocation5 + $0x68] sm:$0xff]
    %v53 = vld [vmem:[#allocation5 + $0x70] sm:$0xff]
    %v54 = vld [vmem:[#allocation5 + $0x78] sm:$0xff]
    %vm55 = vcmask 261120
    %v57 = vsel %vm55, %v38, 0
    %v60 = vsel %vm55, %v39, 0
    %v63 = vsel %vm55, %v40, 0
    %v66 = vsel %vm55, %v41, 0
    %v69 = vsel %vm55, %v42, 0
    %v72 = vsel %vm55, %v43, 0
    %v75 = vsel %vm55, %v44, 0
    %v78 = vsel %vm55, %v45, 0
    %v81 = vsel %vm55, %v46, 0
    %v84 = vsel %vm55, %v47, 0
    %v87 = vsel %vm55, %v48, 0
    %v90 = vsel %vm55, %v49, 0
    %v93 = vsel %vm55, %v50, 0
    %v96 = vsel %vm55, %v51, 0
    %v99 = vsel %vm55, %v52, 0
    %v102 = vsel %vm55, %v53, 0
    %v105 = vsel %vm55, %v54, 0
    %107 = vmatprep.subr.mxu0 0.0
    %108 = vmatpush1.xpose.msra.mxu0 %v105
    %109 = vmatprep.subr.mxu0 0.0
    %110 = vmatpush1.xpose.msra.mxu0 %v102
    %111 = vmatprep.subr.mxu0 0.0
    %112 = vmatpush1.xpose.msra.mxu0 %v99
    %113 = vmatprep.subr.mxu0 0.0
    %114 = vmatpush1.xpose.msra.mxu0 %v96
    %115 = vmatprep.subr.mxu0 0.0
    %116 = vmatpush1.xpose.msra.mxu0 %v93
    %117 = vmatprep.subr.mxu0 0.0
    %118 = vmatpush1.xpose.msra.mxu0 %v90
    %119 = vmatprep.subr.mxu0 0.0
    %120 = vmatpush1.xpose.msra.mxu0 %v87
    %121 = vmatprep.subr.mxu0 0.0
    %122 = vmatpush1.xpose.msra.mxu0 %v84
    %123 = vmatprep.subr.mxu0 0.0
    %124 = vmatpush1.xpose.msra.mxu0 %v81
    %125 = vmatprep.subr.mxu0 0.0
    %126 = vmatpush1.xpose.msra.mxu0 %v78
    %127 = vmatprep.subr.mxu0 0.0
    %128 = vmatpush1.xpose.msra.mxu0 %v75
    %129 = vmatprep.subr.mxu0 0.0
    %130 = vmatpush1.xpose.msra.mxu0 %v72
    %131 = vmatprep.subr.mxu0 0.0
    %132 = vmatpush1.xpose.msra.mxu0 %v69
    %133 = vmatprep.subr.mxu0 0.0
    %134 = vmatpush1.xpose.msra.mxu0 %v66
    %135 = vmatprep.subr.mxu0 0.0
    %136 = vmatpush1.xpose.msra.mxu0 %v63
    %137 = vmatprep.subr.mxu0 0.0
    %138 = vmatpush1.xpose.msra.mxu0 %v60
    %139 = vmatprep.subr.mxu0 0.0
    %140 = vmatpush2.xpose.msra.mxu0 0.0
    %141 = vmatprep.subr.mxu0 0.0
    %142 = vmatpush2.xpose.msra.mxu0 0.0
    %143 = vmatprep.subr.mxu0 0.0
    %144 = vmatpush2.xpose.msra.mxu0 0.0
    %145 = vmatprep.subr.mxu0 0.0
    %146 = vmatpush2.xpose.msra.mxu0 0.0
    %147 = vmatprep.subr.mxu0 0.0
    %148 = vmatpush2.xpose.msra.mxu0 0.0
    %149 = vmatprep.subr.mxu0 0.0
    %150 = vmatpush2.xpose.msra.mxu0 0.0
    %151 = vmatprep.subr.mxu0 0.0
    %152 = vmatpush2.xpose.msra.mxu0 0.0
    %153 = vmatprep.subr.mxu0 0.0
    %154 = vmatpush2.xpose.msra.mxu0 0.0
    %155 = vmatprep.subr.mxu0 0.0
    %156 = vmatpush2.xpose.msra.mxu0 0.0
    %157 = vmatprep.subr.mxu0 0.0
    %158 = vmatpush2.xpose.msra.mxu0 0.0
    %159 = vmatprep.subr.mxu0 0.0
    %160 = vmatpush2.xpose.msra.mxu0 0.0
    %161 = vmatprep.subr.mxu0 0.0
    %162 = vmatpush2.xpose.msra.mxu0 0.0
    %163 = vmatprep.subr.mxu0 0.0
    %164 = vmatpush2.xpose.msra.mxu0 0.0
    %165 = vmatprep.subr.mxu0 0.0
    %166 = vmatpush2.xpose.msra.mxu0 0.0
    %167 = vmatprep.subr.mxu0 0.0
    %168 = vmatpush2.xpose.msra.mxu0 0.0
    %169 = vmatprep.subr.mxu0 0.0
    %170 = vmatpush2.xpose.msra.mxu0 0.0
    %171 = vmatprep.mubr.f32.mxu0 0.0
    %172 = vmatmul.mubr.f32.gmra.mxu0 %v57
    %v173 = vpop.f32.mrf.mxu0
    %v174 = vadd.f32 0.0, %v173
    %v175 = vpop.f32.mrf.mxu0
    %176 = vdwg.mxu0
    %s177 = smul.u32 0, 128
    %s178 = sshra.s32 %s177, 7
    %s179 = sand.u32 %s177, 127
    %s180 = scalar_lea.vmem [#allocation7], %s178
    %181 = vst [vmem:[%s180] sm:$0x1] %v174
    %p182 = scmp.eq.s32.totalorder 0, 0
    // Predicated region
    $region18: #{tpu_custom_call.1} parent=1 // pred_check
      %p183 = pneg %p182
    $region19: #{tpu_custom_call.1} parent=1 // pred_check_branch
      %185 = sbr.rel (%p183) target = $region21
    $region20: #{tpu_custom_call.1} parent=1 // pred_region
      %v186 = vld [vmem:[#allocation7] sm:$0x1]
      %v187 = vlaneseq
      %v188 = vand.u32 %v187, 127
      %vm189 = vcmp.lt.s32.totalorder %v188, 8
      %v190 = vsel %vm189, %v186, -inf
      %vm191 = vcmask 1040384
      %v192 = vsel %vm191, %v190, -inf
      %193 = vmax.xlane.f32.xlu0 %v192
      %v194 = vpop.xlane.xlu0 %193
      %v195 = vsub.f32 %v190, %v194
      %v196 = vmul.f32 %v195, 1.442695
      %v197 = vpow.pop %v196
      %v198 = vsel %vm191, %v197, 0.0
      %199 = vadd.xlane.f32.xlu0 %v198
      %v200 = vpop.xlane.xlu0 %199
      %v201 = vrcp.pop %v200
      %v202 = vmul.f32 %v197, %v201
      %203 = vst [vmem:[#allocation7] sm:$0x1] %v202
    $region21: #{tpu_custom_call.1} parent=1 // pred_fallthru
      _
    // Predicated region
    $region22: #{tpu_custom_call.1} parent=1 // pred_check
      _
    $region23: #{tpu_custom_call.1} parent=1 // pred_check_branch
      %205 = sbr.rel (0) target = $region25
    $region24: #{tpu_custom_call.1} parent=1 // pred_region
      %s207 = ssub.s32 16, 16
      %208 = vsyncadd [#allocation4], %s207
      %s210 = sshll.u32 [#allocation7], 4
      %s211 = int_to_ptr.vmem [resolvable:$true] %s210
      %213 = dma.vmem_to_hbm [thread:$0]  %s211, 16, %s2, [#allocation4]
    $region25: #{tpu_custom_call.1} parent=1 // pred_fallthru
      _
    // Predicated region
    $region26: #{tpu_custom_call.1} parent=1 // pred_check
      _
    $region27: #{tpu_custom_call.1} parent=1 // pred_check_branch
      %215 = sbr.rel (0) target = $region29
    $region28: #{tpu_custom_call.1} parent=1 // pred_region
      %216 = dma.done [#allocation4], 16
    $region29: #{tpu_custom_call.1} parent=1 // pred_fallthru
      _
    %217 = vsyncpa [#allocation3], 1
    %218 = vsyncpa [#allocation6], 1
    %219 = vsyncpa [#allocation4], 1

</llo_original>
